<compile_context>
chip_gen: v7x
topology: tpu7x:2x2x1
jax: 0.10.0
libtpu: 0.0.40
codegen_flags: <defaults>
</compile_context>

<pallas_src>
import jax
import jax.numpy as jnp
from jax.experimental import pallas as pl
from jax.experimental.pallas import tpu as pltpu


# Per-buffer tile budget for the pipelined path.  Input + output, each
# double-buffered, is ~4x this (~8 MiB scoped VMEM) -- under v5e's 16 MiB
# scoped default with headroom for Pallas internal scratch.
_PER_BUFFER_BYTES = 2 * 1024 * 1024

# Below this total size a single un-gridded VMEM block is used.
_SINGLE_BLOCK_BYTES = 1 * 1024 * 1024


def _sublane_multiple(dtype) -> int:
    """Native sublane packing: f32 -> 8 rows, bf16 -> 16, int8/fp8 -> 32."""
    itemsize = jnp.dtype(dtype).itemsize
    return max(8, 32 // max(itemsize, 1))


def _make_elementwise_kernel(func):
    def kernel(x_ref, o_ref):
        # `func` is fused here so the arithmetic runs in the same HBM pass.
        o_ref[...] = func(x_ref[...]).astype(o_ref.dtype)
    return kernel


def _apply_elementwise_2d(func, x2d,
                          per_buffer_bytes=_PER_BUFFER_BYTES,
                          single_block_bytes=_SINGLE_BLOCK_BYTES):
    """Apply an elementwise `func` to a 2-D array via a tiled Pallas kernel."""
    n, flat = x2d.shape
    itemsize = jnp.dtype(x2d.dtype).itemsize
    out_dtype = jax.eval_shape(
        func, jax.ShapeDtypeStruct((n, flat), x2d.dtype)).dtype
    out_shape = jax.ShapeDtypeStruct((n, flat), out_dtype)
    kernel = _make_elementwise_kernel(func)
    total_bytes = n * flat * itemsize

    # --- Small path: one lane-dense block, no grid. ---
    if total_bytes <= single_block_bytes:
        return pl.pallas_call(
            kernel,
            out_shape=out_shape,
            in_specs=[pl.BlockSpec(memory_space=pltpu.MemorySpace.VMEM)],
            out_specs=pl.BlockSpec(memory_space=pltpu.MemorySpace.VMEM),
        )(x2d)

    sublane = _sublane_multiple(x2d.dtype)
    row_bytes = flat * itemsize

    if row_bytes <= per_buffer_bytes:
        # Row tiling only, full lane width (lane-dense output stores).
        fit_rows = per_buffer_bytes // row_bytes
        if fit_rows >= n:
            rows_per_tile = n                      # full dim is always legal
        else:
            rows_per_tile = max(sublane, (fit_rows // sublane) * sublane)
        block = (rows_per_tile, flat)
        grid = (pl.cdiv(n, rows_per_tile),)        # ragged last block is OK
        index_map = lambda i: (i, 0)
        dims = ("parallel",)
    else:
        # Rows wider than the budget: 2-D tiling, columns in 128 multiples.
        rows_per_tile = n if n <= sublane else sublane
        fit_cols = per_buffer_bytes // (rows_per_tile * itemsize)
        cols_per_tile = max(128, (fit_cols // 128) * 128)
        block = (rows_per_tile, cols_per_tile)
        grid = (pl.cdiv(n, rows_per_tile), pl.cdiv(flat, cols_per_tile))
        index_map = lambda i, j: (i, j)
        dims = ("parallel", "parallel")

    return pl.pallas_call(
        kernel,
        out_shape=out_shape,
        grid=grid,
        in_specs=[pl.BlockSpec(block, index_map)],
        out_specs=pl.BlockSpec(block, index_map),
        compiler_params=pltpu.CompilerParams(dimension_semantics=dims),
    )(x2d)


def flatten_forward(x):
    """Lambda(lambda x: x.view(x.size(0), -1)): pure metadata, no kernel."""
    return jnp.reshape(x, (x.shape[0], -1))


def lambda_forward(x, func=None, *,
                   per_buffer_bytes=_PER_BUFFER_BYTES,
                   single_block_bytes=_SINGLE_BLOCK_BYTES):
    """Equivalent of Lambda(func).forward(x).

    func=None  -> the canonical flatten lambda: metadata-only reshape,
                  zero HBM traffic, no Pallas kernel emitted.
    otherwise  -> `func` is treated as elementwise and fused into a single
                  HBM-pass Pallas kernel over a flattened (N, prod(rest))
                  view; the original shape is restored afterwards.
    """
    if func is None:
        return flatten_forward(x)

    # TODO(synk): non-elementwise `func`s (reductions, reorderings) are not
    # lowered to a Pallas kernel here; they would need op-specific kernels.
    n = x.shape[0]
    flat = 1
    for d in x.shape[1:]:
        flat *= d
    x2d = jnp.reshape(x, (n, flat))
    y2d = _apply_elementwise_2d(func, x2d,
                                per_buffer_bytes=per_buffer_bytes,
                                single_block_bytes=single_block_bytes)
    return jnp.reshape(y2d, x.shape)


if __name__ == "__main__":
    key = jax.random.PRNGKey(0)

    # Canonical usage: Lambda(lambda x: x.view(x.size(0), -1)) on NCHW input.
    x = jax.random.normal(key, (2, 4, 16, 16), dtype=jnp.float32)
    y_flat = jax.block_until_ready(lambda_forward(x))        # metadata-only path
    y_flat_ref = jnp.reshape(x, (x.shape[0], -1))
    assert y_flat.shape == (2, 4 * 16 * 16), y_flat.shape
    assert y_flat.dtype == x.dtype
    assert bool(jnp.array_equal(y_flat, y_flat_ref))

    # Kernel path: Lambda with a real elementwise func fused into one HBM pass.
    elem_func = lambda v: jax.nn.gelu(v) * 1.5 + 0.25
    y_elem = jax.block_until_ready(lambda_forward(x, elem_func))   # single-block path
    assert y_elem.shape == x.shape
    assert bool(jnp.allclose(y_elem, elem_func(x), atol=1e-5, rtol=1e-5))

    # Pipelined row-tiled path with a ragged last block (tiny budgets keep the
    # test small while exercising the grid/cdiv logic).
    x_rows = jax.random.normal(jax.random.PRNGKey(1), (20, 1024), dtype=jnp.float32)
    y_rows = jax.block_until_ready(
        lambda_forward(x_rows, elem_func,
                       per_buffer_bytes=32 * 1024, single_block_bytes=16 * 1024))
    assert bool(jnp.allclose(y_rows, elem_func(x_rows), atol=1e-5, rtol=1e-5))

    # 2-D (row x 128-multiple column) tiled path for rows wider than the budget.
    x_wide = jax.random.normal(jax.random.PRNGKey(2), (8, 4096), dtype=jnp.float32)
    y_wide = jax.block_until_ready(
        lambda_forward(x_wide, elem_func,
                       per_buffer_bytes=8 * 1024, single_block_bytes=4 * 1024))
    assert bool(jnp.allclose(y_wide, elem_func(x_wide), atol=1e-5, rtol=1e-5))

    print("KERNEL_OK")
</pallas_src>

<mosaic_0001>
module attributes {stable_mosaic.version = 11 : i64} {
  func.func @kernel(%arg0: memref<2x1024xf32, #tpu.memory_space<vmem>>, %arg1: memref<2x1024xf32, #tpu.memory_space<vmem>>) attributes {dimension_semantics = [], scalar_prefetch = 0 : i64, scratch_operands = 0 : i64, tpu.core_type = #tpu.core_type<tc>} {
    %c0 = arith.constant 0 : index
    %c0_0 = arith.constant 0 : index
    %0 = vector.load %arg0[%c0, %c0_0] : memref<2x1024xf32, #tpu.memory_space<vmem>>, vector<2x1024xf32>
    %1 = arith.mulf %0, %0 : vector<2x1024xf32>
    %2 = arith.mulf %0, %1 : vector<2x1024xf32>
    %cst = arith.constant 4.471500e-02 : f32
    %3 = vector.broadcast %cst : f32 to vector<2x1024xf32>
    %4 = arith.mulf %3, %2 : vector<2x1024xf32>
    %5 = arith.addf %0, %4 : vector<2x1024xf32>
    %cst_1 = arith.constant 0.797884583 : f32
    %6 = vector.broadcast %cst_1 : f32 to vector<2x1024xf32>
    %7 = arith.mulf %6, %5 : vector<2x1024xf32>
    %8 = math.tanh %7 : vector<2x1024xf32>
    %cst_2 = arith.constant 1.000000e+00 : f32
    %9 = vector.broadcast %cst_2 : f32 to vector<2x1024xf32>
    %10 = arith.addf %9, %8 : vector<2x1024xf32>
    %cst_3 = arith.constant 5.000000e-01 : f32
    %11 = vector.broadcast %cst_3 : f32 to vector<2x1024xf32>
    %12 = arith.mulf %11, %10 : vector<2x1024xf32>
    %13 = arith.mulf %0, %12 : vector<2x1024xf32>
    %cst_4 = arith.constant 1.500000e+00 : f32
    %14 = vector.broadcast %cst_4 : f32 to vector<2x1024xf32>
    %15 = arith.mulf %13, %14 : vector<2x1024xf32>
    %cst_5 = arith.constant 2.500000e-01 : f32
    %16 = vector.broadcast %cst_5 : f32 to vector<2x1024xf32>
    %17 = arith.addf %15, %16 : vector<2x1024xf32>
    %c0_6 = arith.constant 0 : index
    %c0_7 = arith.constant 0 : index
    %18 = vector.load %arg1[%c0_6, %c0_7] : memref<2x1024xf32, #tpu.memory_space<vmem>>, vector<2x1024xf32>
    tpu.vector_store %arg1[%c0_6, %c0_7], %17 {strides = array<i32>} : memref<2x1024xf32, #tpu.memory_space<vmem>>, vector<2x1024xf32>,
    return
  }
}

</mosaic_0001>

<llo_original>
// kernel: tpu_custom_call.1
$region0: #{tpu_custom_call.1}
  #allocation0 [shape = 'u32[]', space=smem, size = 0x4, offset = 0x4, fixed_abs, tag = 'smem constant byte address 0x4 - core index']
  #allocation1 [shape = 'u32[144,128]{1,0:T(1,128)}', space=vmem, size = 0x12000, scoped, tag = 'internal scratch']
  %s0 = inlined_call_operand.hbm [shape: f32[2,1024], index: 0, kind: input, shape index: {}]
  %s1 = inlined_call_operand.hbm [shape: f32[2,1024], index: 1, kind: output, shape index: {}]
  %s2 = sld [smem:[#allocation0]]
  $region18: #{tpu_custom_call.1} parent=0
    _
  %s4 = ssub.s32 1, %s2
  %s5 = scalar_select 0, %s4, %s2
  $region1: #{tpu_custom_call.1} parent=0
    #allocation2 [shape = 'u8[8192]{0}', space=vmem, size = 0x2000, scoped, tag = 'input window, operand 0, single buffered']
    #allocation3 [shape = 's32[1]{0}', space=sflag, size = 0x4, scoped, tag = 'scoped memory for tpu_custom_call.1']
    #allocation4 [shape = 's32[1]{0}', space=sflag, size = 0x4, scoped, tag = 'scoped memory for tpu_custom_call.1']
    #allocation5 [shape = 'u8[8192]{0}', space=vmem, size = 0x2000, scoped, tag = 'output window, operand 0, single buffered']
    %6 = vsyncpa [#allocation3], 0
    %7 = vsyncpa [#allocation4], 0
    // Predicated region
    $region2: #{tpu_custom_call.1} parent=1 // pred_check
      _
    $region3: #{tpu_custom_call.1} parent=1 // pred_check_branch
      %9 = sbr.rel (0) target = $region5
    $region4: #{tpu_custom_call.1} parent=1 // pred_region
      %s11 = ssub.s32 256, 256
      %12 = vsyncadd [#allocation3], %s11
      %s14 = sshll.u32 [#allocation2], 4
      %s15 = int_to_ptr.vmem [resolvable:$true] %s14
      %17 = dma.hbm_to_vmem [thread:$0]  %s0, 256, %s15, [#allocation3]
    $region5: #{tpu_custom_call.1} parent=1 // pred_fallthru
      _
    // Predicated region
    $region6: #{tpu_custom_call.1} parent=1 // pred_check
      _
    $region7: #{tpu_custom_call.1} parent=1 // pred_check_branch
      %19 = sbr.rel (0) target = $region9
    $region8: #{tpu_custom_call.1} parent=1 // pred_region
      %20 = dma.done [#allocation3], 256
    $region9: #{tpu_custom_call.1} parent=1 // pred_fallthru
      _
    %v21 = vld [vmem:[#allocation2] sm:$0xff]
    %v22 = vld [vmem:[#allocation2 + $0x8] sm:$0xff]
    %v23 = vmul.f32 %v21, %v21
    %v24 = vmul.f32 %v22, %v22
    %v25 = vmul.f32 %v21, %v23
    %v26 = vmul.f32 %v22, %v24
    %v27 = vmul.f32 %v25, 0.044715
    %v28 = vmul.f32 %v26, 0.044715
    %v29 = vadd.f32 %v21, %v27
    %v30 = vadd.f32 %v22, %v28
    %v31 = vmul.f32 %v29, 0.7978846
    %v32 = vmul.f32 %v30, 0.7978846
    %v33 = vtanh.pop %v31
    %v34 = vtanh.pop %v32
    %v35 = vadd.f32 %v33, 1.0
    %v36 = vadd.f32 %v34, 1.0
    %v37 = vmul.f32 %v35, 0.5
    %v38 = vmul.f32 %v36, 0.5
    %v39 = vmul.f32 %v21, %v37
    %v40 = vmul.f32 %v22, %v38
    %v41 = vmul.f32 %v39, 1.5
    %v42 = vmul.f32 %v40, 1.5
    %v43 = vadd.f32 %v41, 0.25
    %v44 = vadd.f32 %v42, 0.25
    %45 = vst [vmem:[#allocation5] sm:$0xff] %v43
    %46 = vst [vmem:[#allocation5 + $0x8] sm:$0xff] %v44
    // Predicated region
    $region10: #{tpu_custom_call.1} parent=1 // pred_check
      _
    $region11: #{tpu_custom_call.1} parent=1 // pred_check_branch
      %48 = sbr.rel (0) target = $region13
    $region12: #{tpu_custom_call.1} parent=1 // pred_region
      %s50 = ssub.s32 256, 256
      %51 = vsyncadd [#allocation4], %s50
      %s53 = sshll.u32 [#allocation5], 4
      %s54 = int_to_ptr.vmem [resolvable:$true] %s53
      %56 = dma.vmem_to_hbm [thread:$0]  %s54, 256, %s1, [#allocation4]
    $region13: #{tpu_custom_call.1} parent=1 // pred_fallthru
      _
    // Predicated region
    $region14: #{tpu_custom_call.1} parent=1 // pred_check
      _
    $region15: #{tpu_custom_call.1} parent=1 // pred_check_branch
      %58 = sbr.rel (0) target = $region17
    $region16: #{tpu_custom_call.1} parent=1 // pred_region
      %59 = dma.done [#allocation4], 256
    $region17: #{tpu_custom_call.1} parent=1 // pred_fallthru
      _
    %60 = vsyncpa [#allocation3], 1
    %61 = vsyncpa [#allocation4], 1

</llo_original>
